<compile_context>
chip_gen: v5e
topology: v5e:2x2
jax: 0.10.0
libtpu: 0.0.40
codegen_flags: <defaults>
</compile_context>

<pallas_src>
import jax
import jax.numpy as jnp
from jax.experimental import pallas as pl
from jax.experimental.pallas import tpu as pltpu


T_EMB = 32     # logical time-embedding width (as in the PyTorch module)
LANE = 128     # TPU lane width


def _round_up(x, m):
    return -(-x // m) * m


def _silu(x):
    return x * jax.nn.sigmoid(x)


# ----------------------------------------------------------------------------
# Pallas kernel: time-embedding MLP + coord_encoder + coord_pred for one
# batch tile.  Matmul weights are bf16 (f32 accumulation); biases are f32.
# ----------------------------------------------------------------------------
def _mlp_kernel(base_ref, t_ref,
                tw1_ref, tb1_ref, tw2_ref, tb2_ref,
                w1b_ref, w1t_ref, b1_ref,
                w2_ref, b2_ref, w3_ref, b3_ref,
                wp_ref, bp_ref,
                out_ref):
    f32 = jnp.float32
    bf16 = jnp.bfloat16

    # time_embedding layer 1: K=1 rank-1 "matmul" done on the VPU as a
    # broadcast multiply (avoids a pointless MXU push/pop).
    te = _silu(t_ref[...] * tw1_ref[...] + tb1_ref[...])                     # f32
    # time_embedding layer 2 (width padded to 128; zero padding is exact).
    te = _silu(jnp.dot(te.astype(bf16), tw2_ref[...],
                       preferred_element_type=f32) + tb2_ref[...])

    # coord_encoder layer 1:
    #   concat([coords, atom_emb, aromatic]) is pre-packed into base_ref with
    #   the aromatic Linear(1,4) folded into w1b/b1, so this is a single dense
    #   K=128 matmul plus the time-embedding branch.
    h = (jnp.dot(base_ref[...], w1b_ref[...], preferred_element_type=f32)
         + jnp.dot(te.astype(bf16), w1t_ref[...], preferred_element_type=f32)
         + b1_ref[...])
    h = _silu(h)

    # coord_encoder layers 2 & 3
    h = _silu(jnp.dot(h.astype(bf16), w2_ref[...],
                      preferred_element_type=f32) + b2_ref[...])
    h = _silu(jnp.dot(h.astype(bf16), w3_ref[...],
                      preferred_element_type=f32) + b3_ref[...])

    # coord_pred: direct (tb, coord_dim) store (masked lanes, minimal HBM bytes)
    out_ref[...] = (jnp.dot(h.astype(bf16), wp_ref[...],
                            preferred_element_type=f32) + bp_ref[...])


def _pallas_mlp(base, t_in, p, *, batch_tile=1024):
    """base: (B, d_base) bf16 features, t_in: (B, 1) f32.
    Returns (B, coord_dim) f32."""
    B = base.shape[0]
    coord_dim = p["wp"].shape[1]
    k_base_pad = p["w1b"].shape[0]

    # Batch-tile selection: sublane-aligned; prefer >=2 grid steps for moderate
    # batches (megacore on v7x); cap at batch_tile rows.
    b8 = _round_up(B, 8)
    if b8 <= 16:
        tb = b8                                   # tiny batch: one block
    else:
        tb = min(batch_tile, _round_up((b8 + 1) // 2, 8))
    b_pad = _round_up(b8, tb)

    # Pad batch rows (zeros, sliced off afterwards) and lane-pad the feature
    # width to the (zero-row-padded) weight's K.
    base = jnp.pad(base, ((0, b_pad - B), (0, k_base_pad - base.shape[1])))
    t_in = jnp.pad(t_in, ((0, b_pad - B), (0, 0)))

    weights = (p["tw1"], p["tb1"], p["tw2"], p["tb2"],
               p["w1b"], p["w1t"], p["b1"],
               p["w2"], p["b2"], p["w3"], p["b3"],
               p["wp"], p["bp"])

    def row_spec(d):
        # Batch-tiled activation: block moves along the grid axis.
        return pl.BlockSpec((tb, d), lambda i: (i, 0))

    def resident_spec(w):
        # Same block index for every grid step -> weight stays VMEM-resident.
        return pl.BlockSpec(w.shape, lambda i: (0, 0))

    out = pl.pallas_call(
        _mlp_kernel,
        out_shape=jax.ShapeDtypeStruct((b_pad, coord_dim), jnp.float32),
        grid=(b_pad // tb,),
        in_specs=([row_spec(k_base_pad), row_spec(1)]
                  + [resident_spec(w) for w in weights]),
        out_specs=row_spec(coord_dim),
        compiler_params=pltpu.CompilerParams(
            dimension_semantics=("parallel",)),   # shards batch tiles across TCs
    )(base, t_in, *weights)

    return out[:B]


# ----------------------------------------------------------------------------
# Parameter construction (PyTorch-like uniform fan-in init), returning both the
# padded/folded/bf16 kernel params and the raw f32 params for the reference.
# ----------------------------------------------------------------------------
def init_params(key, coord_dim, atom_type_dim, hidden_dim=128):
    num_atoms = coord_dim // 3
    d_coord, d_atom, d_arom = coord_dim, 16 * num_atoms, 4 * num_atoms
    d_base_orig = d_coord + d_atom + d_arom
    input_dim = d_base_orig + T_EMB

    h_pad = _round_up(hidden_dim, LANE)
    t_pad = _round_up(T_EMB, LANE)
    d_base_fold = d_coord + d_atom + num_atoms        # aromatic Linear folded
    k_base_pad = _round_up(d_base_fold, LANE)

    def linear(k, fan_in, fan_out):
        kw, kb = jax.random.split(k)
        bound = 1.0 / jnp.sqrt(jnp.float32(fan_in))
        w = jax.random.uniform(kw, (fan_in, fan_out), jnp.float32, -bound, bound)
        b = jax.random.uniform(kb, (1, fan_out), jnp.float32, -bound, bound)
        return w, b

    keys = jax.random.split(key, 8)
    emb = jax.random.normal(keys[0], (atom_type_dim, 16), jnp.float32)   # nn.Embedding
    ar_w, ar_b = linear(keys[1], 1, 4)                                   # aromatic_embedding
    tw1, tb1 = linear(keys[2], 1, T_EMB)                                 # time_embedding[0]
    tw2, tb2 = linear(keys[3], T_EMB, T_EMB)                             # time_embedding[2]
    w1, b1 = linear(keys[4], input_dim, hidden_dim)                      # coord_encoder[0]
    w2, b2 = linear(keys[5], hidden_dim, hidden_dim)                     # coord_encoder[2]
    w3, b3 = linear(keys[6], hidden_dim, hidden_dim)                     # coord_encoder[4]
    wp, bp = linear(keys[7], hidden_dim, coord_dim)                      # coord_pred

    raw = dict(emb=emb, ar_w=ar_w.reshape(4), ar_b=ar_b.reshape(4),
               tw1=tw1, tb1=tb1, tw2=tw2, tb2=tb2,
               w1=w1, b1=b1, w2=w2, b2=b2, w3=w3, b3=b3, wp=wp, bp=bp)

    # --- Fold aromatic Linear(1,4) into coord_encoder[0] (algebraically exact):
    #   arom_feat[b, 4a+j] = arom[b, a] * ar_w[j] + ar_b[j]
    #   => W1r'[a, :] = sum_j ar_w[j] * W1r[4a+j, :]
    #      b1'       = b1 + sum_{a,j} ar_b[j] * W1r[4a+j, :]
    w1c = w1[:d_coord]
    w1a = w1[d_coord:d_coord + d_atom]
    w1r = w1[d_coord + d_atom:d_base_orig].reshape(num_atoms, 4, hidden_dim)
    w1t = w1[d_base_orig:]
    w1r_fold = jnp.einsum('j,ajh->ah', ar_w.reshape(4), w1r)
    b1_fold = b1 + jnp.einsum('j,ajh->h', ar_b.reshape(4), w1r)[None, :]
    w1_base = jnp.concatenate([w1c, w1a, w1r_fold], axis=0)   # (d_base_fold, hidden)

    def pad2(a, rows, cols):
        return jnp.pad(a, ((0, rows - a.shape[0]), (0, cols - a.shape[1])))

    bf16 = jnp.bfloat16
    kernel_params = dict(
        emb=emb,                                              # gather stays f32
        tw1=pad2(tw1, 1, t_pad), tb1=pad2(tb1, 1, t_pad),     # VPU path, f32
        tw2=pad2(tw2, t_pad, t_pad).astype(bf16), tb2=pad2(tb2, 1, t_pad),
        w1b=pad2(w1_base, k_base_pad, h_pad).astype(bf16),
        w1t=pad2(w1t, t_pad, h_pad).astype(bf16),
        b1=pad2(b1_fold, 1, h_pad),
        w2=pad2(w2, h_pad, h_pad).astype(bf16), b2=pad2(b2, 1, h_pad),
        w3=pad2(w3, h_pad, h_pad).astype(bf16), b3=pad2(b3, 1, h_pad),
        wp=pad2(wp, h_pad, coord_dim).astype(bf16), bp=bp,    # output stays unpadded
    )
    return kernel_params, raw


# ----------------------------------------------------------------------------
# Forward pass (gather + concat as JAX glue, full MLP in Pallas)
# ----------------------------------------------------------------------------
@jax.jit
def forward(params, coords, atom_types, aromaticity, t):
    B = coords.shape[0]
    coords_flat = coords.reshape(B, -1).astype(jnp.float32)

    # atom_embedding lookup -> (B, 16 * num_atoms)
    atom_feat = jnp.take(params["emb"], atom_types, axis=0).reshape(B, -1)

    # Raw per-atom aromaticity (the Linear(1,4) is folded into w1b/b1).
    arom = aromaticity.reshape(B, -1).astype(jnp.float32)

    # Single dense feature block for layer 1 (cast once to bf16 for the MXU).
    base = jnp.concatenate([coords_flat, atom_feat, arom], axis=1).astype(jnp.bfloat16)
    t_in = t.reshape(-1, 1).astype(jnp.float32)

    pred = _pallas_mlp(base, t_in, params)
    return pred.reshape(coords.shape)


# Pure-JAX reference mirroring the PyTorch module exactly (f32, unfolded).
def forward_ref(raw, coords, atom_types, aromaticity, t):
    B = coords.shape[0]
    coords_flat = coords.reshape(B, -1).astype(jnp.float32)
    atom_feat = jnp.take(raw["emb"], atom_types, axis=0).reshape(B, -1)
    arom = aromaticity.reshape(B, -1).astype(jnp.float32)
    arom_feat = (arom[..., None] * raw["ar_w"] + raw["ar_b"]).reshape(B, -1)
    t_in = t.reshape(-1, 1).astype(jnp.float32)

    silu = jax.nn.silu
    te = silu(t_in @ raw["tw1"] + raw["tb1"])
    te = silu(te @ raw["tw2"] + raw["tb2"])
    x = jnp.concatenate([coords_flat, atom_feat, arom_feat, te], axis=1)
    h = silu(x @ raw["w1"] + raw["b1"])
    h = silu(h @ raw["w2"] + raw["b2"])
    h = silu(h @ raw["w3"] + raw["b3"])
    out = h @ raw["wp"] + raw["bp"]
    return out.reshape(coords.shape)


if __name__ == "__main__":
    # Small shapes consistent with the module (module default hidden_dim=128).
    B = 2
    num_atoms = 4
    coord_dim = 3 * num_atoms           # 12
    atom_type_dim = 6
    hidden_dim = 128

    params, raw = init_params(jax.random.PRNGKey(42), coord_dim, atom_type_dim, hidden_dim)

    key = jax.random.PRNGKey(0)
    k1, k2, k3, k4 = jax.random.split(key, 4)
    coords = jax.random.normal(k1, (B, num_atoms, 3), jnp.float32)
    atom_types = jax.random.randint(k2, (B, num_atoms), 0, atom_type_dim, jnp.int32)
    aromaticity = jax.random.bernoulli(k3, 0.5, (B, num_atoms)).astype(jnp.float32)
    t = jax.random.uniform(k4, (B,), jnp.float32)

    out = jax.block_until_ready(forward(params, coords, atom_types, aromaticity, t))
    ref = forward_ref(raw, coords, atom_types, aromaticity, t)
    assert out.shape == coords.shape
    # bf16 MXU operands (f32 accumulation) -> looser tolerance than pure f32.
    assert jnp.allclose(out, ref, atol=5e-2, rtol=5e-2), "Pallas mismatch (small batch)"

    # Larger batch: exercises the multi-tile grid + batch-padding path.
    B2 = 300
    k5, k6, k7, k8 = jax.random.split(jax.random.PRNGKey(1), 4)
    coords2 = jax.random.normal(k5, (B2, num_atoms, 3), jnp.float32)
    atom_types2 = jax.random.randint(k6, (B2, num_atoms), 0, atom_type_dim, jnp.int32)
    aromaticity2 = jax.random.bernoulli(k7, 0.5, (B2, num_atoms)).astype(jnp.float32)
    t2 = jax.random.uniform(k8, (B2,), jnp.float32)

    out2 = jax.block_until_ready(forward(params, coords2, atom_types2, aromaticity2, t2))
    ref2 = forward_ref(raw, coords2, atom_types2, aromaticity2, t2)
    assert jnp.allclose(out2, ref2, atol=5e-2, rtol=5e-2), "Pallas mismatch (large batch)"

    print("KERNEL_OK")
</pallas_src>

<mosaic_0001>
module attributes {stable_mosaic.version = 11 : i64} {
  func.func @_mlp_kernel(%arg0: i32, %arg1: memref<8x128xbf16, #tpu.memory_space<vmem>>, %arg2: memref<8x1xf32, #tpu.memory_space<vmem>>, %arg3: memref<1x128xf32, #tpu.memory_space<vmem>>, %arg4: memref<1x128xf32, #tpu.memory_space<vmem>>, %arg5: memref<128x128xbf16, #tpu.memory_space<vmem>>, %arg6: memref<1x128xf32, #tpu.memory_space<vmem>>, %arg7: memref<128x128xbf16, #tpu.memory_space<vmem>>, %arg8: memref<128x128xbf16, #tpu.memory_space<vmem>>, %arg9: memref<1x128xf32, #tpu.memory_space<vmem>>, %arg10: memref<128x128xbf16, #tpu.memory_space<vmem>>, %arg11: memref<1x128xf32, #tpu.memory_space<vmem>>, %arg12: memref<128x128xbf16, #tpu.memory_space<vmem>>, %arg13: memref<1x128xf32, #tpu.memory_space<vmem>>, %arg14: memref<128x12xbf16, #tpu.memory_space<vmem>>, %arg15: memref<1x12xf32, #tpu.memory_space<vmem>>, %arg16: memref<8x12xf32, #tpu.memory_space<vmem>>) attributes {dimension_semantics = [#tpu.dimension_semantics<parallel>], iteration_bounds = array<i64: 1>, scalar_prefetch = 0 : i64, scratch_operands = 0 : i64, tpu.core_type = #tpu.core_type<tc>, window_params = [{transform_indices = @transform_0, window_bounds = array<i64: 8, 128>}, {transform_indices = @transform_1, window_bounds = array<i64: 8, 1>}, {pipeline_mode = #tpu.pipeline_mode<synchronous>, transform_indices = @transform_2, window_bounds = array<i64: 1, 128>}, {pipeline_mode = #tpu.pipeline_mode<synchronous>, transform_indices = @transform_3, window_bounds = array<i64: 1, 128>}, {pipeline_mode = #tpu.pipeline_mode<synchronous>, transform_indices = @transform_4, window_bounds = array<i64: 128, 128>}, {pipeline_mode = #tpu.pipeline_mode<synchronous>, transform_indices = @transform_5, window_bounds = array<i64: 1, 128>}, {pipeline_mode = #tpu.pipeline_mode<synchronous>, transform_indices = @transform_6, window_bounds = array<i64: 128, 128>}, {pipeline_mode = #tpu.pipeline_mode<synchronous>, transform_indices = @transform_7, window_bounds = array<i64: 128, 128>}, {pipeline_mode = #tpu.pipeline_mode<synchronous>, transform_indices = @transform_8, window_bounds = array<i64: 1, 128>}, {pipeline_mode = #tpu.pipeline_mode<synchronous>, transform_indices = @transform_9, window_bounds = array<i64: 128, 128>}, {pipeline_mode = #tpu.pipeline_mode<synchronous>, transform_indices = @transform_10, window_bounds = array<i64: 1, 128>}, {pipeline_mode = #tpu.pipeline_mode<synchronous>, transform_indices = @transform_11, window_bounds = array<i64: 128, 128>}, {pipeline_mode = #tpu.pipeline_mode<synchronous>, transform_indices = @transform_12, window_bounds = array<i64: 1, 128>}, {pipeline_mode = #tpu.pipeline_mode<synchronous>, transform_indices = @transform_13, window_bounds = array<i64: 128, 12>}, {pipeline_mode = #tpu.pipeline_mode<synchronous>, transform_indices = @transform_14, window_bounds = array<i64: 1, 12>}, {transform_indices = @transform_15, window_bounds = array<i64: 8, 12>}]} {
    %c0 = arith.constant 0 : index
    %c0_0 = arith.constant 0 : index
    %0 = vector.load %arg2[%c0, %c0_0] : memref<8x1xf32, #tpu.memory_space<vmem>>, vector<8x1xf32>
    %c0_1 = arith.constant 0 : index
    %c0_2 = arith.constant 0 : index
    %1 = vector.load %arg3[%c0_1, %c0_2] : memref<1x128xf32, #tpu.memory_space<vmem>>, vector<1x128xf32>
    %2 = vector.broadcast %0 : vector<8x1xf32> to vector<8x128xf32>
    %3 = vector.broadcast %1 : vector<1x128xf32> to vector<8x128xf32>
    %4 = arith.mulf %2, %3 : vector<8x128xf32>
    %c0_3 = arith.constant 0 : index
    %c0_4 = arith.constant 0 : index
    %5 = vector.load %arg4[%c0_3, %c0_4] : memref<1x128xf32, #tpu.memory_space<vmem>>, vector<1x128xf32>
    %6 = vector.broadcast %5 : vector<1x128xf32> to vector<8x128xf32>
    %7 = arith.addf %4, %6 : vector<8x128xf32>
    %8 = arith.negf %7 : vector<8x128xf32>
    %9 = math.exp %8 : vector<8x128xf32>
    %cst = arith.constant 1.000000e+00 : f32
    %10 = vector.broadcast %cst : f32 to vector<8x128xf32>
    %11 = arith.addf %10, %9 : vector<8x128xf32>
    %12 = arith.divf %10, %11 : vector<8x128xf32>
    %13 = arith.mulf %7, %12 : vector<8x128xf32>
    %14 = arith.truncf %13 : vector<8x128xf32> to vector<8x128xbf16>
    %c0_5 = arith.constant 0 : index
    %c0_6 = arith.constant 0 : index
    %15 = vector.load %arg5[%c0_5, %c0_6] : memref<128x128xbf16, #tpu.memory_space<vmem>>, vector<128x128xbf16>
    %cst_7 = arith.constant dense<0.000000e+00> : vector<8x128xf32>
    %16 = tpu.matmul %14, %15, %cst_7 {dimension_numbers = #tpu.dot_dimension_numbers<[1], [0], [0], [1], [0, 0, 1, 1], [], []>} : vector<8x128xbf16>, vector<128x128xbf16>, vector<8x128xf32> -> vector<8x128xf32>
    %c0_8 = arith.constant 0 : index
    %c0_9 = arith.constant 0 : index
    %17 = vector.load %arg6[%c0_8, %c0_9] : memref<1x128xf32, #tpu.memory_space<vmem>>, vector<1x128xf32>
    %18 = vector.broadcast %17 : vector<1x128xf32> to vector<8x128xf32>
    %19 = arith.addf %16, %18 : vector<8x128xf32>
    %20 = arith.negf %19 : vector<8x128xf32>
    %21 = math.exp %20 : vector<8x128xf32>
    %cst_10 = arith.constant 1.000000e+00 : f32
    %22 = vector.broadcast %cst_10 : f32 to vector<8x128xf32>
    %23 = arith.addf %22, %21 : vector<8x128xf32>
    %24 = arith.divf %22, %23 : vector<8x128xf32>
    %25 = arith.mulf %19, %24 : vector<8x128xf32>
    %c0_11 = arith.constant 0 : index
    %c0_12 = arith.constant 0 : index
    %26 = vector.load %arg1[%c0_11, %c0_12] : memref<8x128xbf16, #tpu.memory_space<vmem>>, vector<8x128xbf16>
    %c0_13 = arith.constant 0 : index
    %c0_14 = arith.constant 0 : index
    %27 = vector.load %arg7[%c0_13, %c0_14] : memref<128x128xbf16, #tpu.memory_space<vmem>>, vector<128x128xbf16>
    %cst_15 = arith.constant dense<0.000000e+00> : vector<8x128xf32>
    %28 = tpu.matmul %26, %27, %cst_15 {dimension_numbers = #tpu.dot_dimension_numbers<[1], [0], [0], [1], [0, 0, 1, 1], [], []>} : vector<8x128xbf16>, vector<128x128xbf16>, vector<8x128xf32> -> vector<8x128xf32>
    %29 = arith.truncf %25 : vector<8x128xf32> to vector<8x128xbf16>
    %c0_16 = arith.constant 0 : index
    %c0_17 = arith.constant 0 : index
    %30 = vector.load %arg8[%c0_16, %c0_17] : memref<128x128xbf16, #tpu.memory_space<vmem>>, vector<128x128xbf16>
    %cst_18 = arith.constant dense<0.000000e+00> : vector<8x128xf32>
    %31 = tpu.matmul %29, %30, %cst_18 {dimension_numbers = #tpu.dot_dimension_numbers<[1], [0], [0], [1], [0, 0, 1, 1], [], []>} : vector<8x128xbf16>, vector<128x128xbf16>, vector<8x128xf32> -> vector<8x128xf32>
    %32 = arith.addf %28, %31 : vector<8x128xf32>
    %c0_19 = arith.constant 0 : index
    %c0_20 = arith.constant 0 : index
    %33 = vector.load %arg9[%c0_19, %c0_20] : memref<1x128xf32, #tpu.memory_space<vmem>>, vector<1x128xf32>
    %34 = vector.broadcast %33 : vector<1x128xf32> to vector<8x128xf32>
    %35 = arith.addf %32, %34 : vector<8x128xf32>
    %36 = arith.negf %35 : vector<8x128xf32>
    %37 = math.exp %36 : vector<8x128xf32>
    %cst_21 = arith.constant 1.000000e+00 : f32
    %38 = vector.broadcast %cst_21 : f32 to vector<8x128xf32>
    %39 = arith.addf %38, %37 : vector<8x128xf32>
    %40 = arith.divf %38, %39 : vector<8x128xf32>
    %41 = arith.mulf %35, %40 : vector<8x128xf32>
    %42 = arith.truncf %41 : vector<8x128xf32> to vector<8x128xbf16>
    %c0_22 = arith.constant 0 : index
    %c0_23 = arith.constant 0 : index
    %43 = vector.load %arg10[%c0_22, %c0_23] : memref<128x128xbf16, #tpu.memory_space<vmem>>, vector<128x128xbf16>
    %cst_24 = arith.constant dense<0.000000e+00> : vector<8x128xf32>
    %44 = tpu.matmul %42, %43, %cst_24 {dimension_numbers = #tpu.dot_dimension_numbers<[1], [0], [0], [1], [0, 0, 1, 1], [], []>} : vector<8x128xbf16>, vector<128x128xbf16>, vector<8x128xf32> -> vector<8x128xf32>
    %c0_25 = arith.constant 0 : index
    %c0_26 = arith.constant 0 : index
    %45 = vector.load %arg11[%c0_25, %c0_26] : memref<1x128xf32, #tpu.memory_space<vmem>>, vector<1x128xf32>
    %46 = vector.broadcast %45 : vector<1x128xf32> to vector<8x128xf32>
    %47 = arith.addf %44, %46 : vector<8x128xf32>
    %48 = arith.negf %47 : vector<8x128xf32>
    %49 = math.exp %48 : vector<8x128xf32>
    %cst_27 = arith.constant 1.000000e+00 : f32
    %50 = vector.broadcast %cst_27 : f32 to vector<8x128xf32>
    %51 = arith.addf %50, %49 : vector<8x128xf32>
    %52 = arith.divf %50, %51 : vector<8x128xf32>
    %53 = arith.mulf %47, %52 : vector<8x128xf32>
    %54 = arith.truncf %53 : vector<8x128xf32> to vector<8x128xbf16>
    %c0_28 = arith.constant 0 : index
    %c0_29 = arith.constant 0 : index
    %55 = vector.load %arg12[%c0_28, %c0_29] : memref<128x128xbf16, #tpu.memory_space<vmem>>, vector<128x128xbf16>
    %cst_30 = arith.constant dense<0.000000e+00> : vector<8x128xf32>
    %56 = tpu.matmul %54, %55, %cst_30 {dimension_numbers = #tpu.dot_dimension_numbers<[1], [0], [0], [1], [0, 0, 1, 1], [], []>} : vector<8x128xbf16>, vector<128x128xbf16>, vector<8x128xf32> -> vector<8x128xf32>
    %c0_31 = arith.constant 0 : index
    %c0_32 = arith.constant 0 : index
    %57 = vector.load %arg13[%c0_31, %c0_32] : memref<1x128xf32, #tpu.memory_space<vmem>>, vector<1x128xf32>
    %58 = vector.broadcast %57 : vector<1x128xf32> to vector<8x128xf32>
    %59 = arith.addf %56, %58 : vector<8x128xf32>
    %60 = arith.negf %59 : vector<8x128xf32>
    %61 = math.exp %60 : vector<8x128xf32>
    %cst_33 = arith.constant 1.000000e+00 : f32
    %62 = vector.broadcast %cst_33 : f32 to vector<8x128xf32>
    %63 = arith.addf %62, %61 : vector<8x128xf32>
    %64 = arith.divf %62, %63 : vector<8x128xf32>
    %65 = arith.mulf %59, %64 : vector<8x128xf32>
    %66 = arith.truncf %65 : vector<8x128xf32> to vector<8x128xbf16>
    %c0_34 = arith.constant 0 : index
    %c0_35 = arith.constant 0 : index
    %67 = vector.load %arg14[%c0_34, %c0_35] : memref<128x12xbf16, #tpu.memory_space<vmem>>, vector<128x12xbf16>
    %cst_36 = arith.constant dense<0.000000e+00> : vector<8x12xf32>
    %68 = tpu.matmul %66, %67, %cst_36 {dimension_numbers = #tpu.dot_dimension_numbers<[1], [0], [0], [1], [0, 0, 1, 1], [], []>} : vector<8x128xbf16>, vector<128x12xbf16>, vector<8x12xf32> -> vector<8x12xf32>
    %c0_37 = arith.constant 0 : index
    %c0_38 = arith.constant 0 : index
    %69 = vector.load %arg15[%c0_37, %c0_38] : memref<1x12xf32, #tpu.memory_space<vmem>>, vector<1x12xf32>
    %70 = vector.broadcast %69 : vector<1x12xf32> to vector<8x12xf32>
    %71 = arith.addf %68, %70 : vector<8x12xf32>
    %c0_39 = arith.constant 0 : index
    %c0_40 = arith.constant 0 : index
    %72 = vector.load %arg16[%c0_39, %c0_40] : memref<8x12xf32, #tpu.memory_space<vmem>>, vector<8x12xf32>
    tpu.vector_store %arg16[%c0_39, %c0_40], %71 {strides = array<i32>} : memref<8x12xf32, #tpu.memory_space<vmem>>, vector<8x12xf32>,
    return
  }
  func.func @transform_0(%arg0: i32) -> (i32, i32) {
    %c0_i32 = arith.constant 0 : i32
    %c0_i32_0 = arith.constant 0 : i32
    return %arg0, %c0_i32 : i32, i32
  }
  func.func @transform_1(%arg0: i32) -> (i32, i32) {
    %c0_i32 = arith.constant 0 : i32
    %c0_i32_0 = arith.constant 0 : i32
    return %arg0, %c0_i32 : i32, i32
  }
  func.func @transform_2(%arg0: i32) -> (i32, i32) {
    %c0_i32 = arith.constant 0 : i32
    %c0_i32_0 = arith.constant 0 : i32
    %c0_i32_1 = arith.constant 0 : i32
    return %c0_i32, %c0_i32_0 : i32, i32
  }
  func.func @transform_3(%arg0: i32) -> (i32, i32) {
    %c0_i32 = arith.constant 0 : i32
    %c0_i32_0 = arith.constant 0 : i32
    %c0_i32_1 = arith.constant 0 : i32
    return %c0_i32, %c0_i32_0 : i32, i32
  }
  func.func @transform_4(%arg0: i32) -> (i32, i32) {
    %c0_i32 = arith.constant 0 : i32
    %c0_i32_0 = arith.constant 0 : i32
    %c0_i32_1 = arith.constant 0 : i32
    return %c0_i32, %c0_i32_0 : i32, i32
  }
  func.func @transform_5(%arg0: i32) -> (i32, i32) {
    %c0_i32 = arith.constant 0 : i32
    %c0_i32_0 = arith.constant 0 : i32
    %c0_i32_1 = arith.constant 0 : i32
    return %c0_i32, %c0_i32_0 : i32, i32
  }
  func.func @transform_6(%arg0: i32) -> (i32, i32) {
    %c0_i32 = arith.constant 0 : i32
    %c0_i32_0 = arith.constant 0 : i32
    %c0_i32_1 = arith.constant 0 : i32
    return %c0_i32, %c0_i32_0 : i32, i32
  }
  func.func @transform_7(%arg0: i32) -> (i32, i32) {
    %c0_i32 = arith.constant 0 : i32
    %c0_i32_0 = arith.constant 0 : i32
    %c0_i32_1 = arith.constant 0 : i32
    return %c0_i32, %c0_i32_0 : i32, i32
  }
  func.func @transform_8(%arg0: i32) -> (i32, i32) {
    %c0_i32 = arith.constant 0 : i32
    %c0_i32_0 = arith.constant 0 : i32
    %c0_i32_1 = arith.constant 0 : i32
    return %c0_i32, %c0_i32_0 : i32, i32
  }
  func.func @transform_9(%arg0: i32) -> (i32, i32) {
    %c0_i32 = arith.constant 0 : i32
    %c0_i32_0 = arith.constant 0 : i32
    %c0_i32_1 = arith.constant 0 : i32
    return %c0_i32, %c0_i32_0 : i32, i32
  }
  func.func @transform_10(%arg0: i32) -> (i32, i32) {
    %c0_i32 = arith.constant 0 : i32
    %c0_i32_0 = arith.constant 0 : i32
    %c0_i32_1 = arith.constant 0 : i32
    return %c0_i32, %c0_i32_0 : i32, i32
  }
  func.func @transform_11(%arg0: i32) -> (i32, i32) {
    %c0_i32 = arith.constant 0 : i32
    %c0_i32_0 = arith.constant 0 : i32
    %c0_i32_1 = arith.constant 0 : i32
    return %c0_i32, %c0_i32_0 : i32, i32
  }
  func.func @transform_12(%arg0: i32) -> (i32, i32) {
    %c0_i32 = arith.constant 0 : i32
    %c0_i32_0 = arith.constant 0 : i32
    %c0_i32_1 = arith.constant 0 : i32
    return %c0_i32, %c0_i32_0 : i32, i32
  }
  func.func @transform_13(%arg0: i32) -> (i32, i32) {
    %c0_i32 = arith.constant 0 : i32
    %c0_i32_0 = arith.constant 0 : i32
    %c0_i32_1 = arith.constant 0 : i32
    return %c0_i32, %c0_i32_0 : i32, i32
  }
  func.func @transform_14(%arg0: i32) -> (i32, i32) {
    %c0_i32 = arith.constant 0 : i32
    %c0_i32_0 = arith.constant 0 : i32
    %c0_i32_1 = arith.constant 0 : i32
    return %c0_i32, %c0_i32_0 : i32, i32
  }
  func.func @transform_15(%arg0: i32) -> (i32, i32) {
    %c0_i32 = arith.constant 0 : i32
    %c0_i32_0 = arith.constant 0 : i32
    return %arg0, %c0_i32 : i32, i32
  }
}

</mosaic_0001>

<llo_original>
// kernel: forward.1
$region0: #{forward.1}
  #allocation0 [shape = 'u32[]', space=smem, size = 0x4, offset = 0x4, fixed_abs, tag = 'smem constant byte address 0x4 - core index']
  #allocation1 [shape = 'u32[72,128]{1,0:T(1,128)}', space=vmem, size = 0x9000, scoped, tag = 'internal scratch']
  %s0 = inlined_call_operand.vmem [shape: bf16[8,128], index: 0, kind: input, shape index: {}]
  %s1 = inlined_call_operand.vmem [shape: f32[8,1], index: 1, kind: input, shape index: {}]
  %s2 = inlined_call_operand.vmem [shape: f32[1,128], index: 2, kind: input, shape index: {}]
  %s3 = inlined_call_operand.vmem [shape: f32[1,128], index: 3, kind: input, shape index: {}]
  %s4 = inlined_call_operand.vmem [shape: bf16[128,128], index: 4, kind: input, shape index: {}]
  %s5 = inlined_call_operand.vmem [shape: f32[1,128], index: 5, kind: input, shape index: {}]
  %s6 = inlined_call_operand.vmem [shape: bf16[128,128], index: 6, kind: input, shape index: {}]
  %s7 = inlined_call_operand.hbm [shape: bf16[128,128], index: 7, kind: input, shape index: {}]
  %s8 = inlined_call_operand.vmem [shape: f32[1,128], index: 8, kind: input, shape index: {}]
  %s9 = inlined_call_operand.hbm [shape: bf16[128,128], index: 9, kind: input, shape index: {}]
  %s10 = inlined_call_operand.vmem [shape: f32[1,128], index: 10, kind: input, shape index: {}]
  %s11 = inlined_call_operand.hbm [shape: bf16[128,128], index: 11, kind: input, shape index: {}]
  %s12 = inlined_call_operand.vmem [shape: f32[1,128], index: 12, kind: input, shape index: {}]
  %s13 = inlined_call_operand.vmem [shape: bf16[128,12], index: 13, kind: input, shape index: {}]
  %s14 = inlined_call_operand.vmem [shape: f32[1,12], index: 14, kind: input, shape index: {}]
  %s15 = inlined_call_operand.vmem [shape: f32[8,12], index: 15, kind: output, shape index: {}]
  %s16 = sld [smem:[#allocation0]]
  $region82: #{forward.1} parent=0
    _
  %s18 = ssub.s32 1, %s16
  %s19 = scalar_select 0, %s18, %s16
  $region1: #{forward.1} parent=0
    #allocation2 [shape = 'u8[32768]{0}', space=vmem, size = 0x8000, scoped, tag = 'input window, operand 7, single buffered']
    #allocation3 [shape = 's32[1]{0}', space=sflag, size = 0x4, scoped, tag = 'scoped memory for forward.1']
    #allocation4 [shape = 'u8[32768]{0}', space=vmem, size = 0x8000, scoped, tag = 'input window, operand 9, single buffered']
    #allocation5 [shape = 's32[1]{0}', space=sflag, size = 0x4, scoped, tag = 'scoped memory for forward.1']
    #allocation6 [shape = 'u8[32768]{0}', space=vmem, size = 0x8000, scoped, tag = 'input window, operand 11, single buffered']
    %20 = vsyncpa [#allocation3], 0
    %21 = vsyncpa [#allocation5], 0
    // Predicated region
    $region2: #{forward.1} parent=1 // pred_check
      _
    $region3: #{forward.1} parent=1 // pred_check_branch
      %23 = sbr.rel (0) target = $region5
    $region4: #{forward.1} parent=1 // pred_region
      _
    $region5: #{forward.1} parent=1 // pred_fallthru
      _
    // Predicated region
    $region6: #{forward.1} parent=1 // pred_check
      _
    $region7: #{forward.1} parent=1 // pred_check_branch
      %25 = sbr.rel (0) target = $region9
    $region8: #{forward.1} parent=1 // pred_region
      _
    $region9: #{forward.1} parent=1 // pred_fallthru
      _
    // Predicated region
    $region10: #{forward.1} parent=1 // pred_check
      _
    $region11: #{forward.1} parent=1 // pred_check_branch
      %27 = sbr.rel (0) target = $region13
    $region12: #{forward.1} parent=1 // pred_region
      _
    $region13: #{forward.1} parent=1 // pred_fallthru
      _
    // Predicated region
    $region14: #{forward.1} parent=1 // pred_check
      _
    $region15: #{forward.1} parent=1 // pred_check_branch
      %29 = sbr.rel (0) target = $region17
    $region16: #{forward.1} parent=1 // pred_region
      _
    $region17: #{forward.1} parent=1 // pred_fallthru
      _
    // Predicated region
    $region18: #{forward.1} parent=1 // pred_check
      _
    $region19: #{forward.1} parent=1 // pred_check_branch
      %31 = sbr.rel (0) target = $region21
    $region20: #{forward.1} parent=1 // pred_region
      _
    $region21: #{forward.1} parent=1 // pred_fallthru
      _
    // Predicated region
    $region22: #{forward.1} parent=1 // pred_check
      _
    $region23: #{forward.1} parent=1 // pred_check_branch
      %33 = sbr.rel (0) target = $region25
    $region24: #{forward.1} parent=1 // pred_region
      _
    $region25: #{forward.1} parent=1 // pred_fallthru
      _
    // Predicated region
    $region26: #{forward.1} parent=1 // pred_check
      _
    $region27: #{forward.1} parent=1 // pred_check_branch
      %35 = sbr.rel (0) target = $region29
    $region28: #{forward.1} parent=1 // pred_region
      _
    $region29: #{forward.1} parent=1 // pred_fallthru
      _
    // Predicated region
    $region30: #{forward.1} parent=1 // pred_check
      _
    $region31: #{forward.1} parent=1 // pred_check_branch
      %37 = sbr.rel (0) target = $region33
    $region32: #{forward.1} parent=1 // pred_region
      %39 = vsyncadd [#allocation3], 0
      %s40 = sshll.u32 %s7, 4
      %s41 = int_to_ptr.hbm [resolvable:$true] %s40
      %s42 = sshll.u32 [#allocation2], 4
      %s43 = int_to_ptr.vmem [resolvable:$true] %s42
      %48 = dma.hbm_to_vmem [thread:$0]  %s41, 1024, %s43, [#allocation3], 64, 64, 4
    $region33: #{forward.1} parent=1 // pred_fallthru
      _
    // Predicated region
    $region34: #{forward.1} parent=1 // pred_check
      _
    $region35: #{forward.1} parent=1 // pred_check_branch
      %50 = sbr.rel (0) target = $region37
    $region36: #{forward.1} parent=1 // pred_region
      _
    $region37: #{forward.1} parent=1 // pred_fallthru
      _
    // Predicated region
    $region38: #{forward.1} parent=1 // pred_check
      _
    $region39: #{forward.1} parent=1 // pred_check_branch
      %52 = sbr.rel (0) target = $region41
    $region40: #{forward.1} parent=1 // pred_region
      %54 = vsyncadd [#allocation5], 0
      %s55 = sshll.u32 %s9, 4
      %s56 = int_to_ptr.hbm [resolvable:$true] %s55
      %s57 = sshll.u32 [#allocation4], 4
      %s58 = int_to_ptr.vmem [resolvable:$true] %s57
      %63 = dma.hbm_to_vmem [thread:$0]  %s56, 1024, %s58, [#allocation5], 64, 64, 4
    $region41: #{forward.1} parent=1 // pred_fallthru
      _
    // Predicated region
    $region42: #{forward.1} parent=1 // pred_check
      _
    $region43: #{forward.1} parent=1 // pred_check_branch
      %65 = sbr.rel (0) target = $region45
    $region44: #{forward.1} parent=1 // pred_region
      _
    $region45: #{forward.1} parent=1 // pred_fallthru
      _
    // Predicated region
    $region46: #{forward.1} parent=1 // pred_check
      _
    $region47: #{forward.1} parent=1 // pred_check_branch
      %67 = sbr.rel (0) target = $region49
    $region48: #{forward.1} parent=1 // pred_region
      %69 = vsyncadd [#allocation5], 0
      %s70 = sshll.u32 %s11, 4
      %s71 = int_to_ptr.hbm [resolvable:$true] %s70
      %s72 = sshll.u32 [#allocation6], 4
      %s73 = int_to_ptr.vmem [resolvable:$true] %s72
      %78 = dma.hbm_to_vmem [thread:$0]  %s71, 1024, %s73, [#allocation5], 64, 64, 4
    $region49: #{forward.1} parent=1 // pred_fallthru
      _
    // Predicated region
    $region50: #{forward.1} parent=1 // pred_check
      _
    $region51: #{forward.1} parent=1 // pred_check_branch
      %80 = sbr.rel (0) target = $region53
    $region52: #{forward.1} parent=1 // pred_region
      _
    $region53: #{forward.1} parent=1 // pred_fallthru
      _
    // Predicated region
    $region54: #{forward.1} parent=1 // pred_check
      _
    $region55: #{forward.1} parent=1 // pred_check_branch
      %82 = sbr.rel (0) target = $region57
    $region56: #{forward.1} parent=1 // pred_region
      _
    $region57: #{forward.1} parent=1 // pred_fallthru
      _
    // Predicated region
    $region58: #{forward.1} parent=1 // pred_check
      _
    $region59: #{forward.1} parent=1 // pred_check_branch
      %84 = sbr.rel (0) target = $region61
    $region60: #{forward.1} parent=1 // pred_region
      _
    $region61: #{forward.1} parent=1 // pred_fallthru
      _
    // Predicated region
    $region62: #{forward.1} parent=1 // pred_check
      _
    $region63: #{forward.1} parent=1 // pred_check_branch
      %86 = sbr.rel (0) target = $region65
    $region64: #{forward.1} parent=1 // pred_region
      %88 = dma.done [#allocation3], 1024
    $region65: #{forward.1} parent=1 // pred_fallthru
      _
    // Predicated region
    $region66: #{forward.1} parent=1 // pred_check
      _
    $region67: #{forward.1} parent=1 // pred_check_branch
      %90 = sbr.rel (0) target = $region69
    $region68: #{forward.1} parent=1 // pred_region
      %92 = dma.done [#allocation5], 1024
    $region69: #{forward.1} parent=1 // pred_fallthru
      _
    // Predicated region
    $region70: #{forward.1} parent=1 // pred_check
      _
    $region71: #{forward.1} parent=1 // pred_check_branch
      %94 = sbr.rel (0) target = $region73
    $region72: #{forward.1} parent=1 // pred_region
      %96 = dma.done [#allocation5], 1024
    $region73: #{forward.1} parent=1 // pred_fallthru
      _
    %v97 = vld [vmem:[%s1] sm:$0xff]
    %v98 = vld [vmem:[%s2] sm:$0x1]
    %100 = vset.pattern.permute.xlu0 0
    %101 = vperm.xlu0 %100, %v97
    %v102 = vpop.permute.xlu0 %101
    %v105 = vperm.slane %v98, 0
    %v107 = vmul.f32 %v102, %v105
    %v108 = vld [vmem:[%s3] sm:$0x1]
    %v110 = vperm.slane %v108, 0
    %v112 = vadd.f32 %v107, %v110
    %v113 = vxor.u32 %v112, 2147483648
    %v114 = vmul.f32 %v113, 1.442695
    %v115 = vpow.pop %v114
    %v116 = vadd.f32 %v115, 1.0
    %v117 = vrcp.pop %v116
    %v118 = vmul.f32 %v116, %v117
    %v119 = vsub.f32 1.0, %v118
    %v120 = vmul.f32 %v117, %v119
    %v121 = vadd.f32 %v117, %v120
    %vm122 = vweird.f32 %v116
    %vm123 = vweird.f32 %v117
    %vm124 = vmor %vm122, %vm123
    %v125 = vsel %vm124, %v117, %v121
    %v126 = vand.u32 2147483647, %v116
    %vm127 = vcmp.eq.f32.partialorder %v126, 8.507059e+37
    %v128 = vand.u32 %v116, 2147483648
    %v129 = vor.u32 1.1754944e-38, %v128
    %v130 = vsel %vm127, %v129, %v125
    %v131 = vmul.f32 1.0, %v130
    %v132 = vmul.f32 %v112, %v131
    %v133 = vpack.c.bf16 %v132, %v132
    %v134 = vld [vmem:[%s4] sm:$0xf]
    %v135 = vld [vmem:[%s4 + $0x4] sm:$0xf]
    %v136 = vld [vmem:[%s4 + $0x8] sm:$0xf]
    %v137 = vld [vmem:[%s4 + $0xc] sm:$0xf]
    %v138 = vld [vmem:[%s4 + $0x10] sm:$0xf]
    %v139 = vld [vmem:[%s4 + $0x14] sm:$0xf]
    %v140 = vld [vmem:[%s4 + $0x18] sm:$0xf]
    %v141 = vld [vmem:[%s4 + $0x1c] sm:$0xf]
    %v142 = vld [vmem:[%s4 + $0x20] sm:$0xf]
    %v143 = vld [vmem:[%s4 + $0x24] sm:$0xf]
    %v144 = vld [vmem:[%s4 + $0x28] sm:$0xf]
    %v145 = vld [vmem:[%s4 + $0x2c] sm:$0xf]
    %v146 = vld [vmem:[%s4 + $0x30] sm:$0xf]
    %v147 = vld [vmem:[%s4 + $0x34] sm:$0xf]
    %v148 = vld [vmem:[%s4 + $0x38] sm:$0xf]
    %v149 = vld [vmem:[%s4 + $0x3c] sm:$0xf]
    %v150 = vld [vmem:[%s5] sm:$0x1]
    %v152 = vperm.slane %v150, 0
    %v170 = vunpack.c.l.b16 %v134
    %v171 = vunpack.c.l.b16 %v135
    %v172 = vunpack.c.l.b16 %v136
    %v173 = vunpack.c.l.b16 %v137
    %v174 = vunpack.c.l.b16 %v138
    %v175 = vunpack.c.l.b16 %v139
    %v176 = vunpack.c.l.b16 %v140
    %v177 = vunpack.c.l.b16 %v141
    %v178 = vunpack.c.l.b16 %v142
    %v179 = vunpack.c.l.b16 %v143
    %v180 = vunpack.c.l.b16 %v144
    %v181 = vunpack.c.l.b16 %v145
    %v182 = vunpack.c.l.b16 %v146
    %v183 = vunpack.c.l.b16 %v147
    %v184 = vunpack.c.l.b16 %v148
    %v185 = vunpack.c.l.b16 %v149
    %v186 = vpack.c.b16 %v171, %v170
    %v187 = vpack.c.b16 %v173, %v172
    %v188 = vpack.c.b16 %v175, %v174
    %v189 = vpack.c.b16 %v177, %v176
    %v190 = vpack.c.b16 %v179, %v178
    %v191 = vpack.c.b16 %v181, %v180
    %v192 = vpack.c.b16 %v183, %v182
    %v193 = vpack.c.b16 %v185, %v184
    %202 = vmatpush.bf16.msra.mxu0 %v193
    %203 = vmatpush.bf16.msra.mxu0 %v192
    %204 = vmatpush.bf16.msra.mxu0 %v191
    %205 = vmatpush.bf16.msra.mxu0 %v190
    %206 = vmatpush.bf16.msra.mxu0 %v189
    %207 = vmatpush.bf16.msra.mxu0 %v188
    %208 = vmatpush.bf16.msra.mxu0 %v187
    %209 = vmatpush.bf16.msra.mxu0 %v186
    %210 = vmatmul.bf16.gmra.mxu0 %v133
    %v211 = vpop.f32.mrf.mxu0
    %v212 = vadd.f32 %v152, %v211
    %v213 = vpop.f32.mrf.mxu0
    %214 = vdwg.mxu0
    %v215 = vxor.u32 %v212, 2147483648
    %v216 = vmul.f32 %v215, 1.442695
    %v217 = vpow.pop %v216
    %v218 = vadd.f32 %v217, 1.0
    %v219 = vrcp.pop %v218
    %v220 = vmul.f32 %v218, %v219
    %v221 = vsub.f32 1.0, %v220
    %v222 = vmul.f32 %v219, %v221
    %v223 = vadd.f32 %v219, %v222
    %vm224 = vweird.f32 %v218
    %vm225 = vweird.f32 %v219
    %vm226 = vmor %vm224, %vm225
    %v227 = vsel %vm226, %v219, %v223
    %v228 = vand.u32 2147483647, %v218
    %vm229 = vcmp.eq.f32.partialorder %v228, 8.507059e+37
    %v230 = vand.u32 %v218, 2147483648
    %v231 = vor.u32 1.1754944e-38, %v230
    %v232 = vsel %vm229, %v231, %v227
    %v233 = vmul.f32 1.0, %v232
    %v234 = vmul.f32 %v212, %v233
    %v235 = vld [vmem:[%s0] sm:$0xf]
    %v236 = vld [vmem:[%s6] sm:$0xf]
    %v237 = vld [vmem:[%s6 + $0x4] sm:$0xf]
    %v238 = vld [vmem:[%s6 + $0x8] sm:$0xf]
    %v239 = vld [vmem:[%s6 + $0xc] sm:$0xf]
    %v240 = vld [vmem:[%s6 + $0x10] sm:$0xf]
    %v241 = vld [vmem:[%s6 + $0x14] sm:$0xf]
    %v242 = vld [vmem:[%s6 + $0x18] sm:$0xf]
    %v243 = vld [vmem:[%s6 + $0x1c] sm:$0xf]
    %v244 = vld [vmem:[%s6 + $0x20] sm:$0xf]
    %v245 = vld [vmem:[%s6 + $0x24] sm:$0xf]
    %v246 = vld [vmem:[%s6 + $0x28] sm:$0xf]
    %v247 = vld [vmem:[%s6 + $0x2c] sm:$0xf]
    %v248 = vld [vmem:[%s6 + $0x30] sm:$0xf]
    %v249 = vld [vmem:[%s6 + $0x34] sm:$0xf]
    %v250 = vld [vmem:[%s6 + $0x38] sm:$0xf]
    %v251 = vld [vmem:[%s6 + $0x3c] sm:$0xf]
    %v252 = vpack.c.bf16 %v234, %v234
    %v253 = vld [vmem:[#allocation2] sm:$0xf]
    %v254 = vld [vmem:[#allocation2 + $0x4] sm:$0xf]
    %v255 = vld [vmem:[#allocation2 + $0x8] sm:$0xf]
    %v256 = vld [vmem:[#allocation2 + $0xc] sm:$0xf]
    %v257 = vld [vmem:[#allocation2 + $0x10] sm:$0xf]
    %v258 = vld [vmem:[#allocation2 + $0x14] sm:$0xf]
    %v259 = vld [vmem:[#allocation2 + $0x18] sm:$0xf]
    %v260 = vld [vmem:[#allocation2 + $0x1c] sm:$0xf]
    %v261 = vld [vmem:[#allocation2 + $0x20] sm:$0xf]
    %v262 = vld [vmem:[#allocation2 + $0x24] sm:$0xf]
    %v263 = vld [vmem:[#allocation2 + $0x28] sm:$0xf]
    %v264 = vld [vmem:[#allocation2 + $0x2c] sm:$0xf]
    %v265 = vld [vmem:[#allocation2 + $0x30] sm:$0xf]
    %v266 = vld [vmem:[#allocation2 + $0x34] sm:$0xf]
    %v267 = vld [vmem:[#allocation2 + $0x38] sm:$0xf]
    %v268 = vld [vmem:[#allocation2 + $0x3c] sm:$0xf]
    %v285 = vunpack.c.l.b16 %v253
    %v286 = vunpack.c.l.b16 %v254
    %v287 = vunpack.c.l.b16 %v255
    %v288 = vunpack.c.l.b16 %v256
    %v289 = vunpack.c.l.b16 %v257
    %v290 = vunpack.c.l.b16 %v258
    %v291 = vunpack.c.l.b16 %v259
    %v292 = vunpack.c.l.b16 %v260
    %v293 = vunpack.c.l.b16 %v261
    %v294 = vunpack.c.l.b16 %v262
    %v295 = vunpack.c.l.b16 %v263
    %v296 = vunpack.c.l.b16 %v264
    %v297 = vunpack.c.l.b16 %v265
    %v298 = vunpack.c.l.b16 %v266
    %v299 = vunpack.c.l.b16 %v267
    %v300 = vunpack.c.l.b16 %v268
    %v301 = vpack.c.b16 %v286, %v285
    %v302 = vpack.c.b16 %v288, %v287
    %v303 = vpack.c.b16 %v290, %v289
    %v304 = vpack.c.b16 %v292, %v291
    %v305 = vpack.c.b16 %v294, %v293
    %v306 = vpack.c.b16 %v296, %v295
    %v307 = vpack.c.b16 %v298, %v297
    %v308 = vpack.c.b16 %v300, %v299
    %317 = vmatpush.bf16.msra.mxu0 %v308
    %318 = vmatpush.bf16.msra.mxu0 %v307
    %319 = vmatpush.bf16.msra.mxu0 %v306
    %320 = vmatpush.bf16.msra.mxu0 %v305
    %321 = vmatpush.bf16.msra.mxu0 %v304
    %322 = vmatpush.bf16.msra.mxu0 %v303
    %323 = vmatpush.bf16.msra.mxu0 %v302
    %324 = vmatpush.bf16.msra.mxu0 %v301
    %325 = vmatmul.bf16.gmra.mxu0 %v252
    %v326 = vpop.f32.mrf.mxu0
    %v327 = vadd.f32 0.0, %v326
    %v328 = vpop.f32.mrf.mxu0
    %329 = vdwg.mxu0
    %v346 = vunpack.c.l.b16 %v236
    %v347 = vunpack.c.l.b16 %v237
    %v348 = vunpack.c.l.b16 %v238
    %v349 = vunpack.c.l.b16 %v239
    %v350 = vunpack.c.l.b16 %v240
    %v351 = vunpack.c.l.b16 %v241
    %v352 = vunpack.c.l.b16 %v242
    %v353 = vunpack.c.l.b16 %v243
    %v354 = vunpack.c.l.b16 %v244
    %v355 = vunpack.c.l.b16 %v245
    %v356 = vunpack.c.l.b16 %v246
    %v357 = vunpack.c.l.b16 %v247
    %v358 = vunpack.c.l.b16 %v248
    %v359 = vunpack.c.l.b16 %v249
    %v360 = vunpack.c.l.b16 %v250
    %v361 = vunpack.c.l.b16 %v251
    %v362 = vpack.c.b16 %v347, %v346
    %v363 = vpack.c.b16 %v349, %v348
    %v364 = vpack.c.b16 %v351, %v350
    %v365 = vpack.c.b16 %v353, %v352
    %v366 = vpack.c.b16 %v355, %v354
    %v367 = vpack.c.b16 %v357, %v356
    %v368 = vpack.c.b16 %v359, %v358
    %v369 = vpack.c.b16 %v361, %v360
    %378 = vmatpush.bf16.msra.mxu0 %v369
    %379 = vmatpush.bf16.msra.mxu0 %v368
    %380 = vmatpush.bf16.msra.mxu0 %v367
    %381 = vmatpush.bf16.msra.mxu0 %v366
    %382 = vmatpush.bf16.msra.mxu0 %v365
    %383 = vmatpush.bf16.msra.mxu0 %v364
    %384 = vmatpush.bf16.msra.mxu0 %v363
    %385 = vmatpush.bf16.msra.mxu0 %v362
    %386 = vmatmul.bf16.gmra.mxu0 %v235
    %v387 = vpop.f32.mrf.mxu0
    %v388 = vadd.f32 %v327, %v387
    %v389 = vpop.f32.mrf.mxu0
    %390 = vdwg.mxu0
    %v391 = vld [vmem:[%s8] sm:$0x1]
    %v393 = vperm.slane %v391, 0
    %v395 = vadd.f32 %v388, %v393
    %v396 = vxor.u32 %v395, 2147483648
    %v397 = vmul.f32 %v396, 1.442695
    %v398 = vpow.pop %v397
    %v399 = vadd.f32 %v398, 1.0
    %v400 = vrcp.pop %v399
    %v401 = vmul.f32 %v399, %v400
    %v402 = vsub.f32 1.0, %v401
    %v403 = vmul.f32 %v400, %v402
    %v404 = vadd.f32 %v400, %v403
    %vm405 = vweird.f32 %v399
    %vm406 = vweird.f32 %v400
    %vm407 = vmor %vm405, %vm406
    %v408 = vsel %vm407, %v400, %v404
    %v409 = vand.u32 2147483647, %v399
    %vm410 = vcmp.eq.f32.partialorder %v409, 8.507059e+37
    %v411 = vand.u32 %v399, 2147483648
    %v412 = vor.u32 1.1754944e-38, %v411
    %v413 = vsel %vm410, %v412, %v408
    %v414 = vmul.f32 1.0, %v413
    %v415 = vmul.f32 %v395, %v414
    %v416 = vpack.c.bf16 %v415, %v415
    %v417 = vld [vmem:[#allocation4] sm:$0xf]
    %v418 = vld [vmem:[#allocation4 + $0x4] sm:$0xf]
    %v419 = vld [vmem:[#allocation4 + $0x8] sm:$0xf]
    %v420 = vld [vmem:[#allocation4 + $0xc] sm:$0xf]
    %v421 = vld [vmem:[#allocation4 + $0x10] sm:$0xf]
    %v422 = vld [vmem:[#allocation4 + $0x14] sm:$0xf]
    %v423 = vld [vmem:[#allocation4 + $0x18] sm:$0xf]
    %v424 = vld [vmem:[#allocation4 + $0x1c] sm:$0xf]
    %v425 = vld [vmem:[#allocation4 + $0x20] sm:$0xf]
    %v426 = vld [vmem:[#allocation4 + $0x24] sm:$0xf]
    %v427 = vld [vmem:[#allocation4 + $0x28] sm:$0xf]
    %v428 = vld [vmem:[#allocation4 + $0x2c] sm:$0xf]
    %v429 = vld [vmem:[#allocation4 + $0x30] sm:$0xf]
    %v430 = vld [vmem:[#allocation4 + $0x34] sm:$0xf]
    %v431 = vld [vmem:[#allocation4 + $0x38] sm:$0xf]
    %v432 = vld [vmem:[#allocation4 + $0x3c] sm:$0xf]
    %v433 = vld [vmem:[%s10] sm:$0x1]
    %v435 = vperm.slane %v433, 0
    %v453 = vunpack.c.l.b16 %v417
    %v454 = vunpack.c.l.b16 %v418
    %v455 = vunpack.c.l.b16 %v419
    %v456 = vunpack.c.l.b16 %v420
    %v457 = vunpack.c.l.b16 %v421
    %v458 = vunpack.c.l.b16 %v422
    %v459 = vunpack.c.l.b16 %v423
    %v460 = vunpack.c.l.b16 %v424
    %v461 = vunpack.c.l.b16 %v425
    %v462 = vunpack.c.l.b16 %v426
    %v463 = vunpack.c.l.b16 %v427
    %v464 = vunpack.c.l.b16 %v428
    %v465 = vunpack.c.l.b16 %v429
    %v466 = vunpack.c.l.b16 %v430
    %v467 = vunpack.c.l.b16 %v431
    %v468 = vunpack.c.l.b16 %v432
    %v469 = vpack.c.b16 %v454, %v453
    %v470 = vpack.c.b16 %v456, %v455
    %v471 = vpack.c.b16 %v458, %v457
    %v472 = vpack.c.b16 %v460, %v459
    %v473 = vpack.c.b16 %v462, %v461
    %v474 = vpack.c.b16 %v464, %v463
    %v475 = vpack.c.b16 %v466, %v465
    %v476 = vpack.c.b16 %v468, %v467
    %485 = vmatpush.bf16.msra.mxu0 %v476
    %486 = vmatpush.bf16.msra.mxu0 %v475
    %487 = vmatpush.bf16.msra.mxu0 %v474
    %488 = vmatpush.bf16.msra.mxu0 %v473
    %489 = vmatpush.bf16.msra.mxu0 %v472
    %490 = vmatpush.bf16.msra.mxu0 %v471
    %491 = vmatpush.bf16.msra.mxu0 %v470
    %492 = vmatpush.bf16.msra.mxu0 %v469
    %493 = vmatmul.bf16.gmra.mxu0 %v416
    %v494 = vpop.f32.mrf.mxu0
    %v495 = vadd.f32 %v435, %v494
    %v496 = vpop.f32.mrf.mxu0
    %497 = vdwg.mxu0
    %v498 = vxor.u32 %v495, 2147483648
    %v499 = vmul.f32 %v498, 1.442695
    %v500 = vpow.pop %v499
    %v501 = vadd.f32 %v500, 1.0
    %v502 = vrcp.pop %v501
    %v503 = vmul.f32 %v501, %v502
    %v504 = vsub.f32 1.0, %v503
    %v505 = vmul.f32 %v502, %v504
    %v506 = vadd.f32 %v502, %v505
    %vm507 = vweird.f32 %v501
    %vm508 = vweird.f32 %v502
    %vm509 = vmor %vm507, %vm508
    %v510 = vsel %vm509, %v502, %v506
    %v511 = vand.u32 2147483647, %v501
    %vm512 = vcmp.eq.f32.partialorder %v511, 8.507059e+37
    %v513 = vand.u32 %v501, 2147483648
    %v514 = vor.u32 1.1754944e-38, %v513
    %v515 = vsel %vm512, %v514, %v510
    %v516 = vmul.f32 1.0, %v515
    %v517 = vmul.f32 %v495, %v516
    %v518 = vpack.c.bf16 %v517, %v517
    %v519 = vld [vmem:[#allocation6] sm:$0xf]
    %v520 = vld [vmem:[#allocation6 + $0x4] sm:$0xf]
    %v521 = vld [vmem:[#allocation6 + $0x8] sm:$0xf]
    %v522 = vld [vmem:[#allocation6 + $0xc] sm:$0xf]
    %v523 = vld [vmem:[#allocation6 + $0x10] sm:$0xf]
    %v524 = vld [vmem:[#allocation6 + $0x14] sm:$0xf]
    %v525 = vld [vmem:[#allocation6 + $0x18] sm:$0xf]
    %v526 = vld [vmem:[#allocation6 + $0x1c] sm:$0xf]
    %v527 = vld [vmem:[#allocation6 + $0x20] sm:$0xf]
    %v528 = vld [vmem:[#allocation6 + $0x24] sm:$0xf]
    %v529 = vld [vmem:[#allocation6 + $0x28] sm:$0xf]
    %v530 = vld [vmem:[#allocation6 + $0x2c] sm:$0xf]
    %v531 = vld [vmem:[#allocation6 + $0x30] sm:$0xf]
    %v532 = vld [vmem:[#allocation6 + $0x34] sm:$0xf]
    %v533 = vld [vmem:[#allocation6 + $0x38] sm:$0xf]
    %v534 = vld [vmem:[#allocation6 + $0x3c] sm:$0xf]
    %v535 = vld [vmem:[%s12] sm:$0x1]
    %v537 = vperm.slane %v535, 0
    %v555 = vunpack.c.l.b16 %v519
    %v556 = vunpack.c.l.b16 %v520
    %v557 = vunpack.c.l.b16 %v521
    %v558 = vunpack.c.l.b16 %v522
    %v559 = vunpack.c.l.b16 %v523
    %v560 = vunpack.c.l.b16 %v524
    %v561 = vunpack.c.l.b16 %v525
    %v562 = vunpack.c.l.b16 %v526
    %v563 = vunpack.c.l.b16 %v527
    %v564 = vunpack.c.l.b16 %v528
    %v565 = vunpack.c.l.b16 %v529
    %v566 = vunpack.c.l.b16 %v530
    %v567 = vunpack.c.l.b16 %v531
    %v568 = vunpack.c.l.b16 %v532
    %v569 = vunpack.c.l.b16 %v533
    %v570 = vunpack.c.l.b16 %v534
    %v571 = vpack.c.b16 %v556, %v555
    %v572 = vpack.c.b16 %v558, %v557
    %v573 = vpack.c.b16 %v560, %v559
    %v574 = vpack.c.b16 %v562, %v561
    %v575 = vpack.c.b16 %v564, %v563
    %v576 = vpack.c.b16 %v566, %v565
    %v577 = vpack.c.b16 %v568, %v567
    %v578 = vpack.c.b16 %v570, %v569
    %587 = vmatpush.bf16.msra.mxu0 %v578
    %588 = vmatpush.bf16.msra.mxu0 %v577
    %589 = vmatpush.bf16.msra.mxu0 %v576
    %590 = vmatpush.bf16.msra.mxu0 %v575
    %591 = vmatpush.bf16.msra.mxu0 %v574
    %592 = vmatpush.bf16.msra.mxu0 %v573
    %593 = vmatpush.bf16.msra.mxu0 %v572
    %594 = vmatpush.bf16.msra.mxu0 %v571
    %595 = vmatmul.bf16.gmra.mxu0 %v518
    %v596 = vpop.f32.mrf.mxu0
    %v597 = vadd.f32 %v537, %v596
    %v598 = vpop.f32.mrf.mxu0
    %599 = vdwg.mxu0
    %v600 = vxor.u32 %v597, 2147483648
    %v601 = vmul.f32 %v600, 1.442695
    %v602 = vpow.pop %v601
    %v603 = vadd.f32 %v602, 1.0
    %v604 = vrcp.pop %v603
    %v605 = vmul.f32 %v603, %v604
    %v606 = vsub.f32 1.0, %v605
    %v607 = vmul.f32 %v604, %v606
    %v608 = vadd.f32 %v604, %v607
    %vm609 = vweird.f32 %v603
    %vm610 = vweird.f32 %v604
    %vm611 = vmor %vm609, %vm610
    %v612 = vsel %vm611, %v604, %v608
    %v613 = vand.u32 2147483647, %v603
    %vm614 = vcmp.eq.f32.partialorder %v613, 8.507059e+37
    %v615 = vand.u32 %v603, 2147483648
    %v616 = vor.u32 1.1754944e-38, %v615
    %v617 = vsel %vm614, %v616, %v612
    %v618 = vmul.f32 1.0, %v617
    %v619 = vmul.f32 %v597, %v618
    %v620 = vpack.c.bf16 %v619, %v619
    %v621 = vld [vmem:[%s13] sm:$0xf]
    %v622 = vld [vmem:[%s13 + $0x4] sm:$0xf]
    %v623 = vld [vmem:[%s13 + $0x8] sm:$0xf]
    %v624 = vld [vmem:[%s13 + $0xc] sm:$0xf]
    %v625 = vld [vmem:[%s13 + $0x10] sm:$0xf]
    %v626 = vld [vmem:[%s13 + $0x14] sm:$0xf]
    %v627 = vld [vmem:[%s13 + $0x18] sm:$0xf]
    %v628 = vld [vmem:[%s13 + $0x1c] sm:$0xf]
    %v629 = vld [vmem:[%s13 + $0x20] sm:$0xf]
    %v630 = vld [vmem:[%s13 + $0x24] sm:$0xf]
    %v631 = vld [vmem:[%s13 + $0x28] sm:$0xf]
    %v632 = vld [vmem:[%s13 + $0x2c] sm:$0xf]
    %v633 = vld [vmem:[%s13 + $0x30] sm:$0xf]
    %v634 = vld [vmem:[%s13 + $0x34] sm:$0xf]
    %v635 = vld [vmem:[%s13 + $0x38] sm:$0xf]
    %v636 = vld [vmem:[%s13 + $0x3c] sm:$0xf]
    %v637 = vld [vmem:[%s14] sm:$0x1]
    %v639 = vperm.slane %v637, 0
    %v657 = vunpack.c.l.b16 %v621
    %v658 = vunpack.c.l.b16 %v622
    %v659 = vunpack.c.l.b16 %v623
    %v660 = vunpack.c.l.b16 %v624
    %v661 = vunpack.c.l.b16 %v625
    %v662 = vunpack.c.l.b16 %v626
    %v663 = vunpack.c.l.b16 %v627
    %v664 = vunpack.c.l.b16 %v628
    %v665 = vunpack.c.l.b16 %v629
    %v666 = vunpack.c.l.b16 %v630
    %v667 = vunpack.c.l.b16 %v631
    %v668 = vunpack.c.l.b16 %v632
    %v669 = vunpack.c.l.b16 %v633
    %v670 = vunpack.c.l.b16 %v634
    %v671 = vunpack.c.l.b16 %v635
    %v672 = vunpack.c.l.b16 %v636
    %v673 = vpack.c.b16 %v658, %v657
    %v674 = vpack.c.b16 %v660, %v659
    %v675 = vpack.c.b16 %v662, %v661
    %v676 = vpack.c.b16 %v664, %v663
    %v677 = vpack.c.b16 %v666, %v665
    %v678 = vpack.c.b16 %v668, %v667
    %v679 = vpack.c.b16 %v670, %v669
    %v680 = vpack.c.b16 %v672, %v671
    %689 = vmatpush.bf16.msra.mxu0 %v680
    %690 = vmatpush.bf16.msra.mxu0 %v679
    %691 = vmatpush.bf16.msra.mxu0 %v678
    %692 = vmatpush.bf16.msra.mxu0 %v677
    %693 = vmatpush.bf16.msra.mxu0 %v676
    %694 = vmatpush.bf16.msra.mxu0 %v675
    %695 = vmatpush.bf16.msra.mxu0 %v674
    %696 = vmatpush.bf16.msra.mxu0 %v673
    %697 = vmatmul.bf16.gmra.mxu0 %v620
    %v698 = vpop.f32.mrf.mxu0
    %v699 = vadd.f32 %v639, %v698
    %v700 = vpop.f32.mrf.mxu0
    %701 = vdwg.mxu0
    %vm702 = vcmask 97280
    %703 = vst.msk [vmem:[%s15] sm:$0xff] %vm702, %v699
    // Predicated region
    $region74: #{forward.1} parent=1 // pred_check
      _
    $region75: #{forward.1} parent=1 // pred_check_branch
      %705 = sbr.rel (0) target = $region77
    $region76: #{forward.1} parent=1 // pred_region
      _
    $region77: #{forward.1} parent=1 // pred_fallthru
      _
    // Predicated region
    $region78: #{forward.1} parent=1 // pred_check
      _
    $region79: #{forward.1} parent=1 // pred_check_branch
      %707 = sbr.rel (0) target = $region81
    $region80: #{forward.1} parent=1 // pred_region
      _
    $region81: #{forward.1} parent=1 // pred_fallthru
      _
    %708 = vsyncpa [#allocation3], 1
    %709 = vsyncpa [#allocation5], 1

</llo_original>
